<compile_context>
chip_gen: v5e
topology: v5e:2x2
jax: 0.10.0
libtpu: 0.0.40
codegen_flags: <defaults>
</compile_context>

<pallas_src>
import functools

import jax
import jax.numpy as jnp
from jax.experimental import pallas as pl
from jax.experimental.pallas import tpu as pltpu


def _round_up(x: int, m: int) -> int:
    return ((x + m - 1) // m) * m


def _linear_kernel(x_ref, w_ref, b_ref, o_ref, acc_ref):
    # x_ref : (tm, tk)          w_ref : (classes_p, tk)   (PyTorch layout, no .T)
    # b_ref : (1, classes_p)    o_ref : (tm, classes_p)
    # acc_ref: (tm, classes_p) f32 scratch, resident across the K grid axis.
    k = pl.program_id(1)

    @pl.when(k == 0)
    def _init():
        acc_ref[...] = jnp.zeros_like(acc_ref)

    acc_ref[...] += jax.lax.dot_general(
        x_ref[...],
        w_ref[...],
        dimension_numbers=(((1,), (1,)), ((), ())),   # contract dim-1 with dim-1
        preferred_element_type=jnp.float32,
    )

    @pl.when(k == pl.num_programs(1) - 1)
    def _finalize():
        o_ref[...] = (acc_ref[...] + b_ref[...].astype(jnp.float32)).astype(o_ref.dtype)


@functools.partial(jax.jit, static_argnames=())
def softmax_module_forward(x, weight, bias):
    """Equivalent of Softmax.forward: flatten (if >2D) then Linear(dim, classes)."""
    if x.ndim > 2:
        x = x.reshape(x.shape[0], -1)        # glue: matches torch x.view(B, -1)
    B, dim = x.shape
    classes = weight.shape[0]
    out_dtype = x.dtype

    # ---- Tile / padding choices (lane-dense output, MXU/VMEM friendly) ------
    classes_p = _round_up(classes, 128)                  # full 128-lane output
    tk = min(512, _round_up(dim, 128))                   # K tile (multiple of 128)
    dim_p = _round_up(dim, tk)
    tm = min(256, _round_up(B, 8))                       # batch tile (multiple of 8)
    B_p = _round_up(B, tm)
    # Double-buffered working set (f32):
    #   2*(tm*tk + classes_p*tk + tm*classes_p)*4  <= ~2.5 MiB at the caps above
    # -> comfortably inside the default scoped-VMEM limit on v5e/v6e/v7x.

    # ---- Zero padding (glue; zeros contribute nothing to the dot) -----------
    x_p = jnp.pad(x, ((0, B_p - B), (0, dim_p - dim)))
    w_p = jnp.pad(weight, ((0, classes_p - classes), (0, dim_p - dim)))
    b_p = jnp.pad(bias, (0, classes_p - classes)).reshape(1, classes_p)

    grid = (B_p // tm, dim_p // tk)

    cost = pl.CostEstimate(
        flops=2 * B_p * dim_p * classes_p,
        transcendentals=0,
        bytes_accessed=4 * (B_p * dim_p + classes_p * dim_p + B_p * classes_p),
    )

    out_p = pl.pallas_call(
        _linear_kernel,
        out_shape=jax.ShapeDtypeStruct((B_p, classes_p), out_dtype),
        grid_spec=pltpu.PrefetchScalarGridSpec(
            num_scalar_prefetch=0,
            grid=grid,
            in_specs=[
                pl.BlockSpec((tm, tk), lambda i, k: (i, k)),          # x tiles
                pl.BlockSpec((classes_p, tk), lambda i, k: (0, k)),   # weight K tiles
                pl.BlockSpec((1, classes_p), lambda i, k: (0, 0)),    # bias, resident
            ],
            out_specs=pl.BlockSpec((tm, classes_p), lambda i, k: (i, 0)),
            scratch_shapes=[pltpu.VMEM((tm, classes_p), jnp.float32)],
        ),
        compiler_params=pltpu.CompilerParams(
            dimension_semantics=("parallel", "arbitrary"),
        ),
        cost_estimate=cost,
    )(x_p, w_p, b_p)

    return out_p[:B, :classes]


if __name__ == "__main__":
    # Small shapes consistent with the module: x is (B, C, H, W) -> dim = C*H*W
    B, C, H, W = 2, 4, 16, 16
    dim = C * H * W          # 1024
    classes = 8

    key = jax.random.PRNGKey(0)
    kx, kw, kb = jax.random.split(key, 3)

    x = jax.random.normal(kx, (B, C, H, W), dtype=jnp.float32)
    # Deterministic parameter init (PyTorch nn.Linear-style uniform bound).
    bound = 1.0 / (dim ** 0.5)
    weight = jax.random.uniform(kw, (classes, dim), minval=-bound, maxval=bound,
                                dtype=jnp.float32)
    bias = jax.random.uniform(kb, (classes,), minval=-bound, maxval=bound,
                              dtype=jnp.float32)

    out = softmax_module_forward(x, weight, bias)
    out = jax.block_until_ready(out)

    # Reference check in plain JAX (same semantics as the PyTorch module).
    ref = x.reshape(B, -1) @ weight.T + bias
    assert out.shape == (B, classes)
    assert jnp.allclose(out, ref, atol=1e-4, rtol=1e-4)

    print("KERNEL_OK")
</pallas_src>

<mosaic_0001>
module attributes {stable_mosaic.version = 11 : i64} {
  func.func @_linear_kernel(%arg0: i32, %arg1: i32, %arg2: memref<8x512xf32, #tpu.memory_space<vmem>>, %arg3: memref<128x512xf32, #tpu.memory_space<vmem>>, %arg4: memref<1x128xf32, #tpu.memory_space<vmem>>, %arg5: memref<8x128xf32, #tpu.memory_space<vmem>>, %arg6: memref<8x128xf32, #tpu.memory_space<vmem>>) attributes {dimension_semantics = [#tpu.dimension_semantics<parallel>, #tpu.dimension_semantics<arbitrary>], iteration_bounds = array<i64: 1, 2>, scalar_prefetch = 0 : i64, scratch_operands = 1 : i64, tpu.core_type = #tpu.core_type<tc>, window_params = [{transform_indices = @transform_0, window_bounds = array<i64: 8, 512>}, {transform_indices = @transform_1, window_bounds = array<i64: 128, 512>}, {pipeline_mode = #tpu.pipeline_mode<synchronous>, transform_indices = @transform_2, window_bounds = array<i64: 1, 128>}, {transform_indices = @transform_3, window_bounds = array<i64: 8, 128>}]} {
    %c0_i32 = arith.constant 0 : i32
    %0 = arith.cmpi eq, %arg1, %c0_i32 : i32
    %1 = arith.extui %0 : i1 to i32
    %c0_i32_0 = arith.constant 0 : i32
    %2 = arith.cmpi ne, %1, %c0_i32_0 : i32
    scf.if %2 {
      %cst_9 = arith.constant 0.000000e+00 : f32
      %12 = vector.broadcast %cst_9 : f32 to vector<8x128xf32>
      %c0_10 = arith.constant 0 : index
      %c0_11 = arith.constant 0 : index
      %13 = vector.load %arg6[%c0_10, %c0_11] : memref<8x128xf32, #tpu.memory_space<vmem>>, vector<8x128xf32>
      tpu.vector_store %arg6[%c0_10, %c0_11], %12 {strides = array<i32>} : memref<8x128xf32, #tpu.memory_space<vmem>>, vector<8x128xf32>,
    } else {
    }
    %c0 = arith.constant 0 : index
    %c0_1 = arith.constant 0 : index
    %3 = vector.load %arg6[%c0, %c0_1] : memref<8x128xf32, #tpu.memory_space<vmem>>, vector<8x128xf32>
    %c0_2 = arith.constant 0 : index
    %c0_3 = arith.constant 0 : index
    %4 = vector.load %arg2[%c0_2, %c0_3] : memref<8x512xf32, #tpu.memory_space<vmem>>, vector<8x512xf32>
    %c0_4 = arith.constant 0 : index
    %c0_5 = arith.constant 0 : index
    %5 = vector.load %arg3[%c0_4, %c0_5] : memref<128x512xf32, #tpu.memory_space<vmem>>, vector<128x512xf32>
    %cst = arith.constant dense<0.000000e+00> : vector<8x128xf32>
    %6 = tpu.matmul %4, %5, %cst {dimension_numbers = #tpu.dot_dimension_numbers<[1], [1], [0], [0], [0, 0, 1, 0], [], []>} : vector<8x512xf32>, vector<128x512xf32>, vector<8x128xf32> -> vector<8x128xf32>
    %7 = arith.addf %3, %6 : vector<8x128xf32>
    %c0_6 = arith.constant 0 : index
    %c0_7 = arith.constant 0 : index
    %8 = vector.load %arg6[%c0_6, %c0_7] : memref<8x128xf32, #tpu.memory_space<vmem>>, vector<8x128xf32>
    tpu.vector_store %arg6[%c0_6, %c0_7], %7 {strides = array<i32>} : memref<8x128xf32, #tpu.memory_space<vmem>>, vector<8x128xf32>,
    %c1_i32 = arith.constant 1 : i32
    %9 = arith.cmpi eq, %arg1, %c1_i32 : i32
    %10 = arith.extui %9 : i1 to i32
    %c0_i32_8 = arith.constant 0 : i32
    %11 = arith.cmpi ne, %10, %c0_i32_8 : i32
    scf.if %11 {
      %c0_9 = arith.constant 0 : index
      %c0_10 = arith.constant 0 : index
      %12 = vector.load %arg6[%c0_9, %c0_10] : memref<8x128xf32, #tpu.memory_space<vmem>>, vector<8x128xf32>
      %c0_11 = arith.constant 0 : index
      %c0_12 = arith.constant 0 : index
      %13 = vector.load %arg4[%c0_11, %c0_12] : memref<1x128xf32, #tpu.memory_space<vmem>>, vector<1x128xf32>
      %14 = vector.broadcast %13 : vector<1x128xf32> to vector<8x128xf32>
      %15 = arith.addf %12, %14 : vector<8x128xf32>
      %c0_13 = arith.constant 0 : index
      %c0_14 = arith.constant 0 : index
      %16 = vector.load %arg5[%c0_13, %c0_14] : memref<8x128xf32, #tpu.memory_space<vmem>>, vector<8x128xf32>
      tpu.vector_store %arg5[%c0_13, %c0_14], %15 {strides = array<i32>} : memref<8x128xf32, #tpu.memory_space<vmem>>, vector<8x128xf32>,
    } else {
    }
    return
  }
  func.func @transform_0(%arg0: i32, %arg1: i32) -> (i32, i32) {
    %c0_i32 = arith.constant 0 : i32
    return %arg0, %arg1 : i32, i32
  }
  func.func @transform_1(%arg0: i32, %arg1: i32) -> (i32, i32) {
    %c0_i32 = arith.constant 0 : i32
    %c0_i32_0 = arith.constant 0 : i32
    return %c0_i32, %arg1 : i32, i32
  }
  func.func @transform_2(%arg0: i32, %arg1: i32) -> (i32, i32) {
    %c0_i32 = arith.constant 0 : i32
    %c0_i32_0 = arith.constant 0 : i32
    %c0_i32_1 = arith.constant 0 : i32
    return %c0_i32, %c0_i32_0 : i32, i32
  }
  func.func @transform_3(%arg0: i32, %arg1: i32) -> (i32, i32) {
    %c0_i32 = arith.constant 0 : i32
    %c0_i32_0 = arith.constant 0 : i32
    return %arg0, %c0_i32 : i32, i32
  }
}

</mosaic_0001>

<llo_original>
// kernel: softmax_module_forward.1
$region0: #{softmax_module_forward.1}
  #allocation0 [shape = 'u32[]', space=smem, size = 0x4, offset = 0x4, fixed_abs, tag = 'smem constant byte address 0x4 - core index']
  #allocation1 [shape = 'u32[72,128]{1,0:T(1,128)}', space=vmem, size = 0x9000, scoped, tag = 'internal scratch']
  #allocation2 [shape = 'f32[8,128]{1,0:T(8,128)}', space=vmem, size = 0x1000, scoped, tag = 'scratch operand']
  %s0 = inlined_call_operand.vmem [shape: f32[8,1024], index: 0, kind: input, shape index: {}]
  %s1 = inlined_call_operand.vmem [shape: f32[128,1024], index: 1, kind: input, shape index: {}]
  %s2 = inlined_call_operand.vmem [shape: f32[1,128], index: 2, kind: input, shape index: {}]
  %s3 = inlined_call_operand.vmem [shape: f32[8,128], index: 3, kind: output, shape index: {}]
  %s4 = sld [smem:[#allocation0]]
  $region76: #{softmax_module_forward.1} parent=0
    _
  %s6 = ssub.s32 1, %s4
  %s7 = scalar_select 0, %s6, %s4
  $region1: #{softmax_module_forward.1} parent=0
    #allocation3 [shape = 'u8[524288]{0}', space=vmem, size = 0x80000, scoped, tag = 'input window, operand 1']
    loop: start=0, step=1, limit=4
    $region2: #{softmax_module_forward.1} parent=1 // loop_pre_header
      _
    $region3: #{softmax_module_forward.1} parent=1 // loop_header
      %s9 = sphi 0, %s13
      %p10 = scmp.ge.s32.totalorder %s9, 4
      %s16 = sphi 0, %s28
      %s17 = sphi 0, %s24
      %s18 = sphi 0, %s16
      %s19 = sphi 0, %s17
      %s20 = sphi 0, %s18
      %s21 = sphi 0, %s19
      %s33 = sphi 0, %s35
      %s36 = sphi 0, %s33
      %s37 = sphi 0, %s36
      %s53 = sphi 0, %s37
      %s59 = sphi 0, %s61
      %s62 = sphi 0, %s59
      %s63 = sphi 0, %s62
      %s79 = sphi 0, %s63
      %s83 = sphi 0, %s83
      %s85 = sphi 0, %s83
      %s86 = sphi 0, %s85
      %s100 = sphi 0, %s86
      %s106 = sphi 0, %s108
      %s109 = sphi 0, %s106
      %s110 = sphi 0, %s109
      %s126 = sphi 0, %s110
    $region4: #{softmax_module_forward.1} parent=1 // loop_header_branch
      %12 = sbr.rel (%p10) target = $region8
    $region5: #{softmax_module_forward.1} parent=1 // loop_body
      %s14 = ssub.s32 %s9, 1
      %s15 = ssub.s32 %s9, 2
      %s22 = sadd.s32 1, %s17
      %p23 = scmp.ge.s32.totalorder %s22, 2
      %s24 = scalar_select %p23, 0, %s22
      %s25 = sadd.s32 1, %s16
      %s26 = scalar_select %p23, %s25, %s16
      %p27 = scmp.ge.s32.totalorder %s26, 1
      %s28 = scalar_select %p27, 0, %s26
      %s29 = ssub.s32 %s16, %s28
      %s30 = ssub.s32 %s17, %s24
      %s31 = sor.u32 %s29, %s30
      %p32 = scmp.eq.s32.totalorder %s31, 0
      %s34 = sadd.s32 %s33, 1
      %s35 = scalar_select %p32, %s33, %s34
      %p38 = pneg %p32
      %p39 = scmp.eq.s32.totalorder %s9, 1
      %p40 = por %p38, %p39
      %p41 = scmp.ne.s32.totalorder %s33, %s36
      %p42 = scmp.eq.s32.totalorder %s9, 0
      %p43 = por %p41, %p42
      %p44 = scmp.ne.s32.totalorder %s33, %s36
      %p45 = scmp.eq.s32.totalorder %s14, 1
      %p46 = por %p44, %p45
      %p47 = scmp.ne.s32.totalorder %s36, %s37
      %p48 = scmp.eq.s32.totalorder %s14, 0
      %p49 = por %p47, %p48
      %p50 = scmp.ne.s32.totalorder %s36, %s37
      %p51 = scmp.eq.s32.totalorder %s15, 1
      %p52 = por %p50, %p51
      %p54 = scmp.ne.s32.totalorder %s37, %s53
      %p55 = scmp.eq.s32.totalorder %s15, 0
      %p56 = por %p54, %p55
      %s57 = ssub.s32 %s17, %s24
      %p58 = scmp.eq.s32.totalorder %s57, 0
      %s60 = sadd.s32 %s59, 1
      %s61 = scalar_select %p58, %s59, %s60
      %p64 = pneg %p58
      %p65 = scmp.eq.s32.totalorder %s9, 1
      %p66 = por %p64, %p65
      %p67 = scmp.ne.s32.totalorder %s59, %s62
      %p68 = scmp.eq.s32.totalorder %s9, 0
      %p69 = por %p67, %p68
      %p70 = scmp.ne.s32.totalorder %s59, %s62
      %p71 = scmp.eq.s32.totalorder %s14, 1
      %p72 = por %p70, %p71
      %p73 = scmp.ne.s32.totalorder %s62, %s63
      %p74 = scmp.eq.s32.totalorder %s14, 0
      %p75 = por %p73, %p74
      %p76 = scmp.ne.s32.totalorder %s62, %s63
      %p77 = scmp.eq.s32.totalorder %s15, 1
      %p78 = por %p76, %p77
      %p80 = scmp.ne.s32.totalorder %s63, %s79
      %p81 = scmp.eq.s32.totalorder %s15, 0
      %p82 = por %p80, %p81
      %s84 = sadd.s32 %s83, 1
      %p87 = scmp.eq.s32.totalorder %s9, 1
      %p88 = scmp.ne.s32.totalorder %s83, %s85
      %p89 = scmp.eq.s32.totalorder %s9, 0
      %p90 = por %p88, %p89
      %p91 = scmp.ne.s32.totalorder %s83, %s85
      %p92 = scmp.eq.s32.totalorder %s14, 1
      %p93 = por %p91, %p92
      %p94 = scmp.ne.s32.totalorder %s85, %s86
      %p95 = scmp.eq.s32.totalorder %s14, 0
      %p96 = por %p94, %p95
      %p97 = scmp.ne.s32.totalorder %s85, %s86
      %p98 = scmp.eq.s32.totalorder %s15, 1
      %p99 = por %p97, %p98
      %p101 = scmp.ne.s32.totalorder %s86, %s100
      %p102 = scmp.eq.s32.totalorder %s15, 0
      %p103 = por %p101, %p102
      %s104 = ssub.s32 %s16, %s28
      %p105 = scmp.eq.s32.totalorder %s104, 0
      %s107 = sadd.s32 %s106, 1
      %s108 = scalar_select %p105, %s106, %s107
      %p111 = pneg %p105
      %p112 = scmp.eq.s32.totalorder %s9, 1
      %p113 = por %p111, %p112
      %p114 = scmp.ne.s32.totalorder %s106, %s109
      %p115 = scmp.eq.s32.totalorder %s9, 0
      %p116 = por %p114, %p115
      %p117 = scmp.ne.s32.totalorder %s106, %s109
      %p118 = scmp.eq.s32.totalorder %s14, 1
      %p119 = por %p117, %p118
      %p120 = scmp.ne.s32.totalorder %s109, %s110
      %p121 = scmp.eq.s32.totalorder %s14, 0
      %p122 = por %p120, %p121
      %p123 = scmp.ne.s32.totalorder %s109, %s110
      %p124 = scmp.eq.s32.totalorder %s15, 1
      %p125 = por %p123, %p124
      %p127 = scmp.ne.s32.totalorder %s110, %s126
      %p128 = scmp.eq.s32.totalorder %s15, 0
      %p129 = por %p127, %p128
      %p130 = scmp.le.s32.totalorder 1, %s9
      %p131 = scmp.lt.s32.totalorder %s9, 3
      %p132 = pnand %p130, %p131
      %p133 = pneg %p132
      // Predicated region
      $region9: #{softmax_module_forward.1} parent=5 // pred_check
        _
      $region10: #{softmax_module_forward.1} parent=5 // pred_check_branch
        %135 = sbr.rel (%p132) target = $region12
      $region11: #{softmax_module_forward.1} parent=5 // pred_region
        %s136 = ssub.s32 %s9, 1
        // Predicated region
        $region13: #{softmax_module_forward.1} parent=11 // pred_check
          %p137 = pneg %p96
        $region14: #{softmax_module_forward.1} parent=11 // pred_check_branch
          %139 = sbr.rel (%p137) target = $region16
        $region15: #{softmax_module_forward.1} parent=11 // pred_region
          _
        $region16: #{softmax_module_forward.1} parent=11 // pred_fallthru
          _
      $region12: #{softmax_module_forward.1} parent=5 // pred_fallthru
        _
      %p140 = scmp.lt.s32.totalorder %s9, 2
      // Predicated region
      $region17: #{softmax_module_forward.1} parent=5 // pred_check
        %p141 = pneg %p140
      $region18: #{softmax_module_forward.1} parent=5 // pred_check_branch
        %143 = sbr.rel (%p141) target = $region20
      $region19: #{softmax_module_forward.1} parent=5 // pred_region
        // Predicated region
        $region21: #{softmax_module_forward.1} parent=19 // pred_check
          %p144 = pneg %p43
        $region22: #{softmax_module_forward.1} parent=19 // pred_check_branch
          %146 = sbr.rel (%p144) target = $region24
        $region23: #{softmax_module_forward.1} parent=19 // pred_region
          %s147 = smul.u32 4, %s17
          %p148 = scmp.lt.s32.totalorder %s16, 0
          %s149 = scalar_select %p148, %s16, 0
          %p150 = scmp.lt.s32.totalorder %s147, 7
          %s151 = scalar_select %p150, %s147, 7
          %s152 = smul.addr %s149, 8
          %s153 = sadd.s32 %s151, %s152
          %s154 = smul.addr %s153, 8
          %s155 = scalar_lea.vmem %s0, %s154
          %s156 = smul.u32 4, %s17
        $region24: #{softmax_module_forward.1} parent=19 // pred_fallthru
          _
        // Predicated region
        $region25: #{softmax_module_forward.1} parent=19 // pred_check
          %p157 = pneg %p69
        $region26: #{softmax_module_forward.1} parent=19 // pred_check_branch
          %159 = sbr.rel (%p157) target = $region28
        $region27: #{softmax_module_forward.1} parent=19 // pred_region
          %s160 = sand.u32 %s59, 1
          %s161 = sand.u32 %s59, 1
          %s162 = smul.addr %s161, 512
          %s163 = scalar_lea.vmem [#allocation3], %s162
          %s164 = smul.u32 4, %s17
          %s165 = smul.addr %s164, 8
          %s166 = scalar_lea.vmem %s1, %s165
          // Predicated region
          $region29: #{softmax_module_forward.1} parent=27 // pred_check
            _
          $region30: #{softmax_module_forward.1} parent=27 // pred_check_branch
            %168 = sbr.rel (0) target = $region32
          $region31: #{softmax_module_forward.1} parent=27 // pred_region
            // Predicated region
            $region33: #{softmax_module_forward.1} parent=31 // pred_check
              _
            $region34: #{softmax_module_forward.1} parent=31 // pred_check_branch
              %170 = sbr.rel (0) target = $region36
            $region35: #{softmax_module_forward.1} parent=31 // pred_region
              loop: start=0, step=1, limit=1
              $region37: #{softmax_module_forward.1} parent=35 // loop_pre_header
                _
              $region38: #{softmax_module_forward.1} parent=35 // loop_header
                %s172 = sphi 0, %s176
                %p173 = scmp.ge.s32.totalorder %s172, 1
                %s177 = sphi %s166, %s166
                %s178 = sphi %s163, %s163
              $region39: #{softmax_module_forward.1} parent=35 // loop_header_branch
                %175 = sbr.rel (%p173) target = $region43
              $region40: #{softmax_module_forward.1} parent=35 // loop_body
                %v179 = vld [vmem:[%s177] sm:$0xff]
                %180 = vst [vmem:[%s178] sm:$0xff] %v179
                %v181 = vld [vmem:[%s177 + $0x8] sm:$0xff]
                %182 = vst [vmem:[%s178 + $0x8] sm:$0xff] %v181
                %v183 = vld [vmem:[%s177 + $0x10] sm:$0xff]
                %184 = vst [vmem:[%s178 + $0x10] sm:$0xff] %v183
                %v185 = vld [vmem:[%s177 + $0x18] sm:$0xff]
                %186 = vst [vmem:[%s178 + $0x18] sm:$0xff] %v185
                %v187 = vld [vmem:[%s177 + $0x40] sm:$0xff]
                %188 = vst [vmem:[%s178 + $0x20] sm:$0xff] %v187
                %v189 = vld [vmem:[%s177 + $0x48] sm:$0xff]
                %190 = vst [vmem:[%s178 + $0x28] sm:$0xff] %v189
                %v191 = vld [vmem:[%s177 + $0x50] sm:$0xff]
                %192 = vst [vmem:[%s178 + $0x30] sm:$0xff] %v191
                %v193 = vld [vmem:[%s177 + $0x58] sm:$0xff]
                %194 = vst [vmem:[%s178 + $0x38] sm:$0xff] %v193
                %v195 = vld [vmem:[%s177 + $0x80] sm:$0xff]
                %196 = vst [vmem:[%s178 + $0x40] sm:$0xff] %v195
                %v197 = vld [vmem:[%s177 + $0x88] sm:$0xff]
                %198 = vst [vmem:[%s178 + $0x48] sm:$0xff] %v197
                %v199 = vld [vmem:[%s177 + $0x90] sm:$0xff]
                %200 = vst [vmem:[%s178 + $0x50] sm:$0xff] %v199
                %v201 = vld [vmem:[%s177 + $0x98] sm:$0xff]
                %202 = vst [vmem:[%s178 + $0x58] sm:$0xff] %v201
                %v203 = vld [vmem:[%s177 + $0xc0] sm:$0xff]
                %204 = vst [vmem:[%s178 + $0x60] sm:$0xff] %v203
                %v205 = vld [vmem:[%s177 + $0xc8] sm:$0xff]
                %206 = vst [vmem:[%s178 + $0x68] sm:$0xff] %v205
                %v207 = vld [vmem:[%s177 + $0xd0] sm:$0xff]
                %208 = vst [vmem:[%s178 + $0x70] sm:$0xff] %v207
                %v209 = vld [vmem:[%s177 + $0xd8] sm:$0xff]
                %210 = vst [vmem:[%s178 + $0x78] sm:$0xff] %v209
                %v211 = vld [vmem:[%s177 + $0x100] sm:$0xff]
                %212 = vst [vmem:[%s178 + $0x80] sm:$0xff] %v211
                %v213 = vld [vmem:[%s177 + $0x108] sm:$0xff]
                %214 = vst [vmem:[%s178 + $0x88] sm:$0xff] %v213
                %v215 = vld [vmem:[%s177 + $0x110] sm:$0xff]
                %216 = vst [vmem:[%s178 + $0x90] sm:$0xff] %v215
                %v217 = vld [vmem:[%s177 + $0x118] sm:$0xff]
                %218 = vst [vmem:[%s178 + $0x98] sm:$0xff] %v217
                %v219 = vld [vmem:[%s177 + $0x140] sm:$0xff]
                %220 = vst [vmem:[%s178 + $0xa0] sm:$0xff] %v219
                %v221 = vld [vmem:[%s177 + $0x148] sm:$0xff]
                %222 = vst [vmem:[%s178 + $0xa8] sm:$0xff] %v221
                %v223 = vld [vmem:[%s177 + $0x150] sm:$0xff]
                %224 = vst [vmem:[%s178 + $0xb0] sm:$0xff] %v223
                %v225 = vld [vmem:[%s177 + $0x158] sm:$0xff]
                %226 = vst [vmem:[%s178 + $0xb8] sm:$0xff] %v225
                %v227 = vld [vmem:[%s177 + $0x180] sm:$0xff]
                %228 = vst [vmem:[%s178 + $0xc0] sm:$0xff] %v227
                %v229 = vld [vmem:[%s177 + $0x188] sm:$0xff]
                %230 = vst [vmem:[%s178 + $0xc8] sm:$0xff] %v229
                %v231 = vld [vmem:[%s177 + $0x190] sm:$0xff]
                %232 = vst [vmem:[%s178 + $0xd0] sm:$0xff] %v231
                %v233 = vld [vmem:[%s177 + $0x198] sm:$0xff]
                %234 = vst [vmem:[%s178 + $0xd8] sm:$0xff] %v233
                %v235 = vld [vmem:[%s177 + $0x1c0] sm:$0xff]
                %236 = vst [vmem:[%s178 + $0xe0] sm:$0xff] %v235
                %v237 = vld [vmem:[%s177 + $0x1c8] sm:$0xff]
                %238 = vst [vmem:[%s178 + $0xe8] sm:$0xff] %v237
                %v239 = vld [vmem:[%s177 + $0x1d0] sm:$0xff]
                %240 = vst [vmem:[%s178 + $0xf0] sm:$0xff] %v239
                %v241 = vld [vmem:[%s177 + $0x1d8] sm:$0xff]
                %242 = vst [vmem:[%s178 + $0xf8] sm:$0xff] %v241
                %v243 = vld [vmem:[%s177 + $0x200] sm:$0xff]
                %244 = vst [vmem:[%s178 + $0x100] sm:$0xff] %v243
                %v245 = vld [vmem:[%s177 + $0x208] sm:$0xff]
                %246 = vst [vmem:[%s178 + $0x108] sm:$0xff] %v245
                %v247 = vld [vmem:[%s177 + $0x210] sm:$0xff]
                %248 = vst [vmem:[%s178 + $0x110] sm:$0xff] %v247
                %v249 = vld [vmem:[%s177 + $0x218] sm:$0xff]
                %250 = vst [vmem:[%s178 + $0x118] sm:$0xff] %v249
                %v251 = vld [vmem:[%s177 + $0x240] sm:$0xff]
                %252 = vst [vmem:[%s178 + $0x120] sm:$0xff] %v251
                %v253 = vld [vmem:[%s177 + $0x248] sm:$0xff]
                %254 = vst [vmem:[%s178 + $0x128] sm:$0xff] %v253
                %v255 = vld [vmem:[%s177 + $0x250] sm:$0xff]
                %256 = vst [vmem:[%s178 + $0x130] sm:$0xff] %v255
                %v257 = vld [vmem:[%s177 + $0x258] sm:$0xff]
                %258 = vst [vmem:[%s178 + $0x138] sm:$0xff] %v257
                %v259 = vld [vmem:[%s177 + $0x280] sm:$0xff]
                %260 = vst [vmem:[%s178 + $0x140] sm:$0xff] %v259
                %v261 = vld [vmem:[%s177 + $0x288] sm:$0xff]
                %262 = vst [vmem:[%s178 + $0x148] sm:$0xff] %v261
                %v263 = vld [vmem:[%s177 + $0x290] sm:$0xff]
                %264 = vst [vmem:[%s178 + $0x150] sm:$0xff] %v263
                %v265 = vld [vmem:[%s177 + $0x298] sm:$0xff]
                %266 = vst [vmem:[%s178 + $0x158] sm:$0xff] %v265
                %v267 = vld [vmem:[%s177 + $0x2c0] sm:$0xff]
                %268 = vst [vmem:[%s178 + $0x160] sm:$0xff] %v267
                %v269 = vld [vmem:[%s177 + $0x2c8] sm:$0xff]
                %270 = vst [vmem:[%s178 + $0x168] sm:$0xff] %v269
                %v271 = vld [vmem:[%s177 + $0x2d0] sm:$0xff]
                %272 = vst [vmem:[%s178 + $0x170] sm:$0xff] %v271
                %v273 = vld [vmem:[%s177 + $0x2d8] sm:$0xff]
                %274 = vst [vmem:[%s178 + $0x178] sm:$0xff] %v273
                %v275 = vld [vmem:[%s177 + $0x300] sm:$0xff]
                %276 = vst [vmem:[%s178 + $0x180] sm:$0xff] %v275
                %v277 = vld [vmem:[%s177 + $0x308] sm:$0xff]
                %278 = vst [vmem:[%s178 + $0x188] sm:$0xff] %v277
                %v279 = vld [vmem:[%s177 + $0x310] sm:$0xff]
                %280 = vst [vmem:[%s178 + $0x190] sm:$0xff] %v279
                %v281 = vld [vmem:[%s177 + $0x318] sm:$0xff]
                %282 = vst [vmem:[%s178 + $0x198] sm:$0xff] %v281
                %v283 = vld [vmem:[%s177 + $0x340] sm:$0xff]
                %284 = vst [vmem:[%s178 + $0x1a0] sm:$0xff] %v283
                %v285 = vld [vmem:[%s177 + $0x348] sm:$0xff]
                %286 = vst [vmem:[%s178 + $0x1a8] sm:$0xff] %v285
                %v287 = vld [vmem:[%s177 + $0x350] sm:$0xff]
                %288 = vst [vmem:[%s178 + $0x1b0] sm:$0xff] %v287
                %v289 = vld [vmem:[%s177 + $0x358] sm:$0xff]
                %290 = vst [vmem:[%s178 + $0x1b8] sm:$0xff] %v289
                %v291 = vld [vmem:[%s177 + $0x380] sm:$0xff]
                %292 = vst [vmem:[%s178 + $0x1c0] sm:$0xff] %v291
                %v293 = vld [vmem:[%s177 + $0x388] sm:$0xff]
                %294 = vst [vmem:[%s178 + $0x1c8] sm:$0xff] %v293
                %v295 = vld [vmem:[%s177 + $0x390] sm:$0xff]
                %296 = vst [vmem:[%s178 + $0x1d0] sm:$0xff] %v295
                %v297 = vld [vmem:[%s177 + $0x398] sm:$0xff]
                %298 = vst [vmem:[%s178 + $0x1d8] sm:$0xff] %v297
                %v299 = vld [vmem:[%s177 + $0x3c0] sm:$0xff]
                %300 = vst [vmem:[%s178 + $0x1e0] sm:$0xff] %v299
                %v301 = vld [vmem:[%s177 + $0x3c8] sm:$0xff]
                %302 = vst [vmem:[%s178 + $0x1e8] sm:$0xff] %v301
                %v303 = vld [vmem:[%s177 + $0x3d0] sm:$0xff]
                %304 = vst [vmem:[%s178 + $0x1f0] sm:$0xff] %v303
                %v305 = vld [vmem:[%s177 + $0x3d8] sm:$0xff]
                %306 = vst [vmem:[%s178 + $0x1f8] sm:$0xff] %v305
              $region41: #{softmax_module_forward.1} parent=35 // loop_footer
                %s176 = sadd.s32 1, %s172
              $region42: #{softmax_module_forward.1} parent=35 // loop_footer_branch
                %171 = sbr.rel target = $region38
              $region43: #{softmax_module_forward.1} parent=35 // loop_exit
                _
            $region36: #{softmax_module_forward.1} parent=31 // pred_fallthru
              _
            // Predicated region
            $region44: #{softmax_module_forward.1} parent=31 // pred_check
              _
            $region45: #{softmax_module_forward.1} parent=31 // pred_check_branch
              %308 = sbr.rel target = $region47
            $region46: #{softmax_module_forward.1} parent=31 // pred_region
              _
            $region47: #{softmax_module_forward.1} parent=31 // pred_fallthru
              _
          $region32: #{softmax_module_forward.1} parent=27 // pred_fallthru
            _
          %309 = vnop
        $region28: #{softmax_module_forward.1} parent=19 // pred_fallthru
          _
      $region20: #{softmax_module_forward.1} parent=5 // pred_fallthru
        _
      %p310 = scmp.le.s32.totalorder 1, %s9
      %p311 = scmp.lt.s32.totalorder %s9, 3
      %p312 = pnand %p310, %p311
      %p313 = pneg %p312
      // Predicated region
      $region48: #{softmax_module_forward.1} parent=5 // pred_check
        _
      $region49: #{softmax_module_forward.1} parent=5 // pred_check_branch
        %315 = sbr.rel (%p312) target = $region51
      $region50: #{softmax_module_forward.1} parent=5 // pred_region
        %s316 = ssub.s32 %s9, 1
        %s317 = sand.u32 %s62, 1
        %s318 = sand.u32 %s62, 1
        %s319 = smul.addr %s318, 512
        %s320 = scalar_lea.vmem [#allocation3], %s319
        // Predicated region
        $region52: #{softmax_module_forward.1} parent=50 // pred_check
          %p321 = pneg %p75
        $region53: #{softmax_module_forward.1} parent=50 // pred_check_branch
          %323 = sbr.rel (%p321) target = $region55
        $region54: #{softmax_module_forward.1} parent=50 // pred_region
          _
        $region55: #{softmax_module_forward.1} parent=50 // pred_fallthru
          _
        %s324 = smul.u32 4, %s19
        %p325 = scmp.lt.s32.totalorder %s18, 0
        %s326 = scalar_select %p325, %s18, 0
        %p327 = scmp.lt.s32.totalorder %s324, 7
        %s328 = scalar_select %p327, %s324, 7
        %s329 = smul.addr %s326, 8
        %s330 = sadd.s32 %s328, %s329
        %s331 = smul.addr %s330, 8
        %s332 = scalar_lea.vmem %s0, %s331
        %p333 = pneg %p49
        %p334 = pneg %p46
        %s335 = sand.u32 %s62, 1
        %s336 = sand.u32 %s62, 1
        %s337 = smul.addr %s336, 512
        %s338 = scalar_lea.vmem [#allocation3], %s337
        %p339 = pneg %p75
        %p340 = pneg %p72
        %p341 = pneg %p96
        %p342 = pneg %p93
        %p343 = pneg %p122
        %p344 = pneg %p119
        %p345 = scmp.lt.s32.totalorder %s18, 0
        %s346 = scalar_select %p345, %s18, 0
        %s347 = smul.addr %s346, 8
        %s348 = scalar_lea.vmem %s3, %s347
        %s349 = smul.u32 4, %s19
        %p350 = scmp.lt.s32.totalorder %s18, 0
        %s351 = scalar_select %p350, %s18, 0
        %p352 = scmp.lt.s32.totalorder %s349, 7
        %s353 = scalar_select %p352, %s349, 7
        %s354 = smul.addr %s351, 8
        %s355 = sadd.s32 %s353, %s354
        %s356 = smul.addr %s355, 8
        %s357 = scalar_lea.vmem %s0, %s356
        %s358 = smul.u32 4, %s19
        %s359 = smul.u32 4, %s19
        %p360 = scmp.lt.s32.totalorder %s18, 0
        %s361 = scalar_select %p360, %s18, 0
        %s362 = smul.addr %s361, 8
        %s363 = scalar_lea.vmem %s3, %s362
        %p364 = scmp.eq.s32.totalorder %s19, 0
        // Predicated region
        $region56: #{softmax_module_forward.1} parent=50 // pred_check
          %p365 = pneg %p364
        $region57: #{softmax_module_forward.1} parent=50 // pred_check_branch
          %367 = sbr.rel (%p365) target = $region59
        $region58: #{softmax_module_forward.1} parent=50 // pred_region
          %368 = vst [vmem:[#allocation2] sm:$0xff] 0.0
        $region59: #{softmax_module_forward.1} parent=50 // pred_fallthru
          _
        %v369 = vld [vmem:[#allocation2] sm:$0xff]
        %v370 = vld [vmem:[%s357] sm:$0xff]
        %v371 = vld [vmem:[%s357 + $0x8] sm:$0xff]
        %v372 = vld [vmem:[%s357 + $0x10] sm:$0xff]
        %v373 = vld [vmem:[%s357 + $0x18] sm:$0xff]
        %v374 = vld [vmem:[%s320] sm:$0xff]
        %v375 = vld [vmem:[%s320 + $0x8] sm:$0xff]
        %v376 = vld [vmem:[%s320 + $0x10] sm:$0xff]
        %v377 = vld [vmem:[%s320 + $0x18] sm:$0xff]
        %v378 = vld [vmem:[%s320 + $0x20] sm:$0xff]
        %v379 = vld [vmem:[%s320 + $0x28] sm:$0xff]
        %v380 = vld [vmem:[%s320 + $0x30] sm:$0xff]
        %v381 = vld [vmem:[%s320 + $0x38] sm:$0xff]
        %v382 = vld [vmem:[%s320 + $0x40] sm:$0xff]
        %v383 = vld [vmem:[%s320 + $0x48] sm:$0xff]
        %v384 = vld [vmem:[%s320 + $0x50] sm:$0xff]
        %v385 = vld [vmem:[%s320 + $0x58] sm:$0xff]
        %v386 = vld [vmem:[%s320 + $0x60] sm:$0xff]
        %v387 = vld [vmem:[%s320 + $0x68] sm:$0xff]
        %v388 = vld [vmem:[%s320 + $0x70] sm:$0xff]
        %v389 = vld [vmem:[%s320 + $0x78] sm:$0xff]
        %v390 = vld [vmem:[%s320 + $0x80] sm:$0xff]
        %v391 = vld [vmem:[%s320 + $0x88] sm:$0xff]
        %v392 = vld [vmem:[%s320 + $0x90] sm:$0xff]
        %v393 = vld [vmem:[%s320 + $0x98] sm:$0xff]
        %v394 = vld [vmem:[%s320 + $0xa0] sm:$0xff]
        %v395 = vld [vmem:[%s320 + $0xa8] sm:$0xff]
        %v396 = vld [vmem:[%s320 + $0xb0] sm:$0xff]
        %v397 = vld [vmem:[%s320 + $0xb8] sm:$0xff]
        %v398 = vld [vmem:[%s320 + $0xc0] sm:$0xff]
        %v399 = vld [vmem:[%s320 + $0xc8] sm:$0xff]
        %v400 = vld [vmem:[%s320 + $0xd0] sm:$0xff]
        %v401 = vld [vmem:[%s320 + $0xd8] sm:$0xff]
        %v402 = vld [vmem:[%s320 + $0xe0] sm:$0xff]
        %v403 = vld [vmem:[%s320 + $0xe8] sm:$0xff]
        %v404 = vld [vmem:[%s320 + $0xf0] sm:$0xff]
        %v405 = vld [vmem:[%s320 + $0xf8] sm:$0xff]
        %v406 = vld [vmem:[%s320 + $0x100] sm:$0xff]
        %v407 = vld [vmem:[%s320 + $0x108] sm:$0xff]
        %v408 = vld [vmem:[%s320 + $0x110] sm:$0xff]
        %v409 = vld [vmem:[%s320 + $0x118] sm:$0xff]
        %v410 = vld [vmem:[%s320 + $0x120] sm:$0xff]
        %v411 = vld [vmem:[%s320 + $0x128] sm:$0xff]
        %v412 = vld [vmem:[%s320 + $0x130] sm:$0xff]
        %v413 = vld [vmem:[%s320 + $0x138] sm:$0xff]
        %v414 = vld [vmem:[%s320 + $0x140] sm:$0xff]
        %v415 = vld [vmem:[%s320 + $0x148] sm:$0xff]
        %v416 = vld [vmem:[%s320 + $0x150] sm:$0xff]
        %v417 = vld [vmem:[%s320 + $0x158] sm:$0xff]
        %v418 = vld [vmem:[%s320 + $0x160] sm:$0xff]
        %v419 = vld [vmem:[%s320 + $0x168] sm:$0xff]
        %v420 = vld [vmem:[%s320 + $0x170] sm:$0xff]
        %v421 = vld [vmem:[%s320 + $0x178] sm:$0xff]
        %v422 = vld [vmem:[%s320 + $0x180] sm:$0xff]
        %v423 = vld [vmem:[%s320 + $0x188] sm:$0xff]
        %v424 = vld [vmem:[%s320 + $0x190] sm:$0xff]
        %v425 = vld [vmem:[%s320 + $0x198] sm:$0xff]
        %v426 = vld [vmem:[%s320 + $0x1a0] sm:$0xff]
        %v427 = vld [vmem:[%s320 + $0x1a8] sm:$0xff]
        %v428 = vld [vmem:[%s320 + $0x1b0] sm:$0xff]
        %v429 = vld [vmem:[%s320 + $0x1b8] sm:$0xff]
        %v430 = vld [vmem:[%s320 + $0x1c0] sm:$0xff]
        %v431 = vld [vmem:[%s320 + $0x1c8] sm:$0xff]
        %v432 = vld [vmem:[%s320 + $0x1d0] sm:$0xff]
        %v433 = vld [vmem:[%s320 + $0x1d8] sm:$0xff]
        %v434 = vld [vmem:[%s320 + $0x1e0] sm:$0xff]
        %v435 = vld [vmem:[%s320 + $0x1e8] sm:$0xff]
        %v436 = vld [vmem:[%s320 + $0x1f0] sm:$0xff]
        %v437 = vld [vmem:[%s320 + $0x1f8] sm:$0xff]
        %438 = vmatpush.xpose.msra.mxu0 %v434
        %439 = vmatpush.xpose.msra.mxu0 %v430
        %440 = vmatpush.xpose.msra.mxu0 %v426
        %441 = vmatpush.xpose.msra.mxu0 %v422
        %442 = vmatpush.xpose.msra.mxu0 %v418
        %443 = vmatpush.xpose.msra.mxu0 %v414
        %444 = vmatpush.xpose.msra.mxu0 %v410
        %445 = vmatpush.xpose.msra.mxu0 %v406
        %446 = vmatpush.xpose.msra.mxu0 %v402
        %447 = vmatpush.xpose.msra.mxu0 %v398
        %448 = vmatpush.xpose.msra.mxu0 %v394
        %449 = vmatpush.xpose.msra.mxu0 %v390
        %450 = vmatpush.xpose.msra.mxu0 %v386
        %451 = vmatpush.xpose.msra.mxu0 %v382
        %452 = vmatpush.xpose.msra.mxu0 %v378
        %453 = vmatpush.xpose.msra.mxu0 %v374
        %454 = vmatmul.f32.gmra.mxu0 %v370
        %v455 = vpop.f32.mrf.mxu0
        %v456 = vadd.f32 0.0, %v455
        %457 = vdwg.mxu0
        %458 = vmatpush.xpose.msra.mxu0 %v435
        %459 = vmatpush.xpose.msra.mxu0 %v431
        %460 = vmatpush.xpose.msra.mxu0 %v427
        %461 = vmatpush.xpose.msra.mxu0 %v423
        %462 = vmatpush.xpose.msra.mxu0 %v419
        %463 = vmatpush.xpose.msra.mxu0 %v415
        %464 = vmatpush.xpose.msra.mxu0 %v411
        %465 = vmatpush.xpose.msra.mxu0 %v407
        %466 = vmatpush.xpose.msra.mxu0 %v403
        %467 = vmatpush.xpose.msra.mxu0 %v399
        %468 = vmatpush.xpose.msra.mxu0 %v395
        %469 = vmatpush.xpose.msra.mxu0 %v391
        %470 = vmatpush.xpose.msra.mxu0 %v387
        %471 = vmatpush.xpose.msra.mxu0 %v383
        %472 = vmatpush.xpose.msra.mxu0 %v379
        %473 = vmatpush.xpose.msra.mxu0 %v375
        %474 = vmatmul.f32.gmra.mxu0 %v371
        %v475 = vpop.f32.mrf.mxu0
        %v476 = vadd.f32 %v456, %v475
        %477 = vdwg.mxu0
        %478 = vmatpush.xpose.msra.mxu0 %v436
        %479 = vmatpush.xpose.msra.mxu0 %v432
        %480 = vmatpush.xpose.msra.mxu0 %v428
        %481 = vmatpush.xpose.msra.mxu0 %v424
        %482 = vmatpush.xpose.msra.mxu0 %v420
        %483 = vmatpush.xpose.msra.mxu0 %v416
        %484 = vmatpush.xpose.msra.mxu0 %v412
        %485 = vmatpush.xpose.msra.mxu0 %v408
        %486 = vmatpush.xpose.msra.mxu0 %v404
        %487 = vmatpush.xpose.msra.mxu0 %v400
        %488 = vmatpush.xpose.msra.mxu0 %v396
        %489 = vmatpush.xpose.msra.mxu0 %v392
        %490 = vmatpush.xpose.msra.mxu0 %v388
        %491 = vmatpush.xpose.msra.mxu0 %v384
        %492 = vmatpush.xpose.msra.mxu0 %v380
        %493 = vmatpush.xpose.msra.mxu0 %v376
        %494 = vmatmul.f32.gmra.mxu0 %v372
        %v495 = vpop.f32.mrf.mxu0
        %v496 = vadd.f32 %v476, %v495
        %497 = vdwg.mxu0
        %498 = vmatpush.xpose.msra.mxu0 %v437
        %499 = vmatpush.xpose.msra.mxu0 %v433
        %500 = vmatpush.xpose.msra.mxu0 %v429
        %501 = vmatpush.xpose.msra.mxu0 %v425
        %502 = vmatpush.xpose.msra.mxu0 %v421
        %503 = vmatpush.xpose.msra.mxu0 %v417
        %504 = vmatpush.xpose.msra.mxu0 %v413
        %505 = vmatpush.xpose.msra.mxu0 %v409
        %506 = vmatpush.xpose.msra.mxu0 %v405
        %507 = vmatpush.xpose.msra.mxu0 %v401
        %508 = vmatpush.xpose.msra.mxu0 %v397
        %509 = vmatpush.xpose.msra.mxu0 %v393
        %510 = vmatpush.xpose.msra.mxu0 %v389
        %511 = vmatpush.xpose.msra.mxu0 %v385
        %512 = vmatpush.xpose.msra.mxu0 %v381
        %513 = vmatpush.xpose.msra.mxu0 %v377
        %514 = vmatmul.f32.gmra.mxu0 %v373
        %v515 = vpop.f32.mrf.mxu0
        %v516 = vadd.f32 %v496, %v515
        %517 = vdwg.mxu0
        %v518 = vadd.f32 %v369, %v516
        %519 = vst [vmem:[#allocation2] sm:$0xff] %v518
        %p520 = scmp.eq.s32.totalorder %s19, 1
        // Predicated region
        $region60: #{softmax_module_forward.1} parent=50 // pred_check
          %p521 = pneg %p520
        $region61: #{softmax_module_forward.1} parent=50 // pred_check_branch
          %523 = sbr.rel (%p521) target = $region63
        $region62: #{softmax_module_forward.1} parent=50 // pred_region
          %v524 = vld [vmem:[#allocation2] sm:$0xff]
          %v525 = vld [vmem:[%s2] sm:$0x1]
          %v527 = vperm.slane %v525, 0
          %v529 = vadd.f32 %v524, %v527
          %530 = vst [vmem:[%s363] sm:$0xff] %v529
        $region63: #{softmax_module_forward.1} parent=50 // pred_fallthru
          _
        %p531 = scmp.lt.s32.totalorder %s18, 0
        %s532 = scalar_select %p531, %s18, 0
        %s533 = smul.addr %s532, 8
        %s534 = scalar_lea.vmem %s3, %s533
        // Predicated region
        $region64: #{softmax_module_forward.1} parent=50 // pred_check
          %p535 = pneg %p119
        $region65: #{softmax_module_forward.1} parent=50 // pred_check_branch
          %537 = sbr.rel (%p535) target = $region67
        $region66: #{softmax_module_forward.1} parent=50 // pred_region
          _
        $region67: #{softmax_module_forward.1} parent=50 // pred_fallthru
          _
        // Predicated region
        $region68: #{softmax_module_forward.1} parent=50 // pred_check
          %p538 = pneg %p119
        $region69: #{softmax_module_forward.1} parent=50 // pred_check_branch
          %540 = sbr.rel (%p538) target = $region71
        $region70: #{softmax_module_forward.1} parent=50 // pred_region
          %p541 = scmp.lt.s32.totalorder %s18, 0
          %s542 = scalar_select %p541, %s18, 0
          %s543 = smul.addr %s542, 8
          %s544 = scalar_lea.vmem %s3, %s543
        $region71: #{softmax_module_forward.1} parent=50 // pred_fallthru
          _
      $region51: #{softmax_module_forward.1} parent=5 // pred_fallthru
        _
      %p545 = scmp.le.s32.totalorder 2, %s9
      // Predicated region
      $region72: #{softmax_module_forward.1} parent=5 // pred_check
        %p546 = pneg %p545
      $region73: #{softmax_module_forward.1} parent=5 // pred_check_branch
        %548 = sbr.rel (%p546) target = $region75
      $region74: #{softmax_module_forward.1} parent=5 // pred_region
        %s549 = ssub.s32 %s9, 2
      $region75: #{softmax_module_forward.1} parent=5 // pred_fallthru
        _
    $region6: #{softmax_module_forward.1} parent=1 // loop_footer
      %s13 = sadd.s32 1, %s9
    $region7: #{softmax_module_forward.1} parent=1 // loop_footer_branch
      %8 = sbr.rel target = $region3
    $region8: #{softmax_module_forward.1} parent=1 // loop_exit
      _

</llo_original>
